<compile_context>
chip_gen: v7x
topology: tpu7x:2x2x1
jax: 0.10.0
libtpu: 0.0.40
codegen_flags: <defaults>
</compile_context>

<pallas_src>
import functools

import jax
import jax.numpy as jnp
from jax import lax
from jax.experimental import pallas as pl
from jax.experimental.pallas import tpu as pltpu


def _round_up(x, m):
    return ((x + m - 1) // m) * m


def pack_params(weights, biases):
    """Pack all Linear layers into one slab: rows = layers (8-aligned offsets),
    cols = [W_i (out_i x in_i) | b_i (out_i x 1)], zero padded.

    Returns (slab, layer_meta) with layer_meta = ((row_off, out_d, in_d), ...).
    """
    meta = []
    row = 0
    max_cols = 1
    for w in weights:
        out_d, in_d = int(w.shape[0]), int(w.shape[1])
        meta.append((row, out_d, in_d))
        row = _round_up(row + out_d, 8)          # keep sublane offsets 8-aligned
        max_cols = max(max_cols, in_d + 1)
    slab = jnp.zeros((row, max_cols), jnp.float32)
    for (ro, out_d, in_d), w, b in zip(meta, weights, biases):
        slab = slab.at[ro:ro + out_d, 0:in_d].set(w.astype(jnp.float32))
        slab = slab.at[ro:ro + out_d, in_d].set(b.astype(jnp.float32))
    return slab, tuple(meta)


def _net_kernel(residual, layer_meta, sub_tile, x_ref, p_ref, out_ref):
    """x_ref/out_ref blocks: (feat, batch_tile); p_ref: packed param slab."""
    n_linear = len(layer_meta)
    n_sub = x_ref.shape[1] // sub_tile

    def compute(start):
        x = x_ref[:, pl.ds(start, sub_tile)]        # (n_dim, sub_tile)
        h = x
        for li, (ro, out_d, in_d) in enumerate(layer_meta):
            w = p_ref[ro:ro + out_d, 0:in_d]        # static slice of resident slab
            b = p_ref[ro:ro + out_d, in_d:in_d + 1]
            # MXU matmul: contraction over the tiny feature dim, free dim = lanes.
            h = jnp.dot(w, h, preferred_element_type=jnp.float32) + b
            if li < n_linear - 1:
                h = jnp.tanh(h)                     # EUP slot
        if residual:
            h = x + h
        out_ref[:, pl.ds(start, sub_tile)] = h      # lane-dense store

    if n_sub == 1:
        compute(0)
    else:
        # Rolled loop bounds the vreg working set to one sub-tile.
        def body(s, carry):
            compute(pl.multiple_of(s * sub_tile, sub_tile))
            return carry
        lax.fori_loop(0, n_sub, body, 0)


def _auto_batch_tile(n):
    # >=2 tiles when possible (feeds both v7x TensorCores); each tile as fat as
    # practical (overhead-bound regime), capped at 1024 lanes; multiples of 512
    # above 512 lanes so the 512-lane inner sub-tile divides evenly.
    half = -(-n // 2) if n > 128 else n
    tile = max(128, _round_up(half, 128))
    if tile > 512:
        tile = min(1024, _round_up(tile, 512))
    return min(tile, _round_up(n, 128))


def net_forward_fm(x_fm, param_slab, layer_meta, *, residual=True, batch_tile=None):
    """Feature-major forward: x_fm is (n_dim, n_pad) float32, n_pad a multiple of
    batch_tile. Returns (out_dim, n_pad). Use this in hot loops to avoid per-call
    transpose/pad churn."""
    n_dim, n_pad = x_fm.shape
    if batch_tile is None:
        batch_tile = _auto_batch_tile(n_pad)
    assert batch_tile % 128 == 0
    assert n_pad % batch_tile == 0, "pad the lane axis to a multiple of batch_tile"
    n_tiles = n_pad // batch_tile
    if batch_tile <= 512:
        sub_tile = batch_tile
    else:
        sub_tile = next(s for s in (512, 384, 256, 128) if batch_tile % s == 0)

    out_dim = layer_meta[-1][1]
    assert (not residual) or out_dim == n_dim

    # Advisory cost estimate for XLA's scheduler.
    flops = 2 * n_pad * sum(o * i for _, o, i in layer_meta)
    transcendentals = n_pad * sum(o for _, o, _ in layer_meta[:-1])
    bytes_accessed = 4 * (x_fm.size + out_dim * n_pad + param_slab.size)

    kernel = functools.partial(_net_kernel, residual, layer_meta, sub_tile)

    return pl.pallas_call(
        kernel,
        out_shape=jax.ShapeDtypeStruct((out_dim, n_pad), jnp.float32),
        grid=(n_tiles,),
        in_specs=[
            pl.BlockSpec((n_dim, batch_tile), lambda i: (0, i)),
            # Whole slab, constant block index -> VMEM-resident across the grid.
            pl.BlockSpec(param_slab.shape, lambda i: (0, 0)),
        ],
        out_specs=pl.BlockSpec((out_dim, batch_tile), lambda i: (0, i)),
        compiler_params=pltpu.CompilerParams(
            dimension_semantics=("parallel",)),
        cost_estimate=pl.CostEstimate(
            flops=flops,
            transcendentals=transcendentals,
            bytes_accessed=bytes_accessed),
    )(x_fm, param_slab)


def net_forward(x, weights, biases, *, residual=True, batch_tile=None):
    """PyTorch-layout convenience wrapper: x is (N, n_dim), returns (N, n_dim).

    For repeated calls (integrator inner loop) pre-pack params once with
    pack_params() and keep the state feature-major via net_forward_fm."""
    N, n_dim = x.shape
    assert weights[0].shape[1] == n_dim
    if residual:
        assert weights[-1].shape[0] == n_dim       # arch[0] == arch[-1]

    param_slab, layer_meta = pack_params(weights, biases)

    if batch_tile is None:
        batch_tile = _auto_batch_tile(N)
    n_pad = _round_up(N, batch_tile)
    x_fm = jnp.zeros((n_dim, n_pad), jnp.float32).at[:, :N].set(
        x.astype(jnp.float32).T)

    out_fm = net_forward_fm(x_fm, param_slab, layer_meta,
                            residual=residual, batch_tile=batch_tile)
    return out_fm[:, :N].T


def init_params(arch, key):
    """Deterministic init mimicking torch.nn.Linear default U[-1/sqrt(fan_in), +].
    Weights stored in PyTorch layout (out_features, in_features)."""
    weights, biases = [], []
    for i in range(len(arch) - 1):
        fan_in, fan_out = arch[i], arch[i + 1]
        key, kw, kb = jax.random.split(key, 3)
        bound = 1.0 / jnp.sqrt(float(fan_in))
        weights.append(jax.random.uniform(kw, (fan_out, fan_in), jnp.float32,
                                          -bound, bound))
        biases.append(jax.random.uniform(kb, (fan_out,), jnp.float32,
                                         -bound, bound))
    return weights, biases


def net_forward_ref(x, weights, biases, *, residual=True):
    """Pure-JAX reference (batch-major, PyTorch-style) for correctness checking."""
    h = x
    n_linear = len(weights)
    for i in range(n_linear):
        h = h @ weights[i].T + biases[i]
        if i < n_linear - 1:
            h = jnp.tanh(h)
    return x + h if residual else h


if __name__ == "__main__":
    # arch must satisfy arch[0] == arch[-1]; dt / step_gap don't affect forward().
    arch = [4, 32, 32, 4]
    N = 512   # batch ("n" in the PyTorch docstring)

    key = jax.random.PRNGKey(0)
    key, kx = jax.random.split(key)
    x = jax.random.normal(kx, (N, arch[0]), jnp.float32)
    weights, biases = init_params(arch, key)

    ref = net_forward_ref(x, weights, biases, residual=True)

    # Default config: batch_tile=256 -> 2 parallel tiles (both v7x TCs busy).
    out = jax.block_until_ready(net_forward(x, weights, biases, residual=True))
    assert out.shape == (N, arch[0])
    assert jnp.allclose(out, ref, atol=1e-5, rtol=1e-5), "mismatch (default tile)"

    # Single fat block (v5e/v6e-style) with the in-kernel 512-lane sub-tile loop.
    out_fat = jax.block_until_ready(
        net_forward(x, weights, biases, residual=True, batch_tile=1024))
    assert jnp.allclose(out_fat, ref, atol=1e-5, rtol=1e-5), "mismatch (fat tile)"

    print("KERNEL_OK")
</pallas_src>

<mosaic_0001>
module attributes {stable_mosaic.version = 11 : i64} {
  func.func @_net_kernel(%arg0: i32, %arg1: memref<4x256xf32, #tpu.memory_space<vmem>>, %arg2: memref<72x33xf32, #tpu.memory_space<vmem>>, %arg3: memref<4x256xf32, #tpu.memory_space<vmem>>) attributes {dimension_semantics = [#tpu.dimension_semantics<parallel>], iteration_bounds = array<i64: 2>, scalar_prefetch = 0 : i64, scratch_operands = 0 : i64, tpu.core_type = #tpu.core_type<tc>, window_params = [{transform_indices = @transform_0, window_bounds = array<i64: 4, 256>}, {pipeline_mode = #tpu.pipeline_mode<synchronous>, transform_indices = @transform_1, window_bounds = array<i64: 72, 33>}, {transform_indices = @transform_2, window_bounds = array<i64: 4, 256>}]} {
    %c0 = arith.constant 0 : index
    %c0_0 = arith.constant 0 : index
    %0 = vector.load %arg1[%c0, %c0_0] : memref<4x256xf32, #tpu.memory_space<vmem>>, vector<4x256xf32>
    %c0_1 = arith.constant 0 : index
    %c0_2 = arith.constant 0 : index
    %1 = vector.load %arg2[%c0_1, %c0_2] : memref<72x33xf32, #tpu.memory_space<vmem>>, vector<32x4xf32>
    %c0_3 = arith.constant 0 : index
    %c4 = arith.constant 4 : index
    %2 = vector.load %arg2[%c0_3, %c4] : memref<72x33xf32, #tpu.memory_space<vmem>>, vector<32x1xf32>
    %cst = arith.constant dense<0.000000e+00> : vector<32x256xf32>
    %3 = tpu.matmul %1, %0, %cst {dimension_numbers = #tpu.dot_dimension_numbers<[1], [0], [0], [1], [0, 0, 1, 1], [], []>} : vector<32x4xf32>, vector<4x256xf32>, vector<32x256xf32> -> vector<32x256xf32>
    %4 = vector.broadcast %2 : vector<32x1xf32> to vector<32x256xf32>
    %5 = arith.addf %3, %4 : vector<32x256xf32>
    %6 = math.tanh %5 : vector<32x256xf32>
    %c32 = arith.constant 32 : index
    %c0_4 = arith.constant 0 : index
    %7 = vector.load %arg2[%c32, %c0_4] : memref<72x33xf32, #tpu.memory_space<vmem>>, vector<32x32xf32>
    %c32_5 = arith.constant 32 : index
    %c32_6 = arith.constant 32 : index
    %8 = vector.load %arg2[%c32_5, %c32_6] : memref<72x33xf32, #tpu.memory_space<vmem>>, vector<32x1xf32>
    %cst_7 = arith.constant dense<0.000000e+00> : vector<32x256xf32>
    %9 = tpu.matmul %7, %6, %cst_7 {dimension_numbers = #tpu.dot_dimension_numbers<[1], [0], [0], [1], [0, 0, 1, 1], [], []>} : vector<32x32xf32>, vector<32x256xf32>, vector<32x256xf32> -> vector<32x256xf32>
    %10 = vector.broadcast %8 : vector<32x1xf32> to vector<32x256xf32>
    %11 = arith.addf %9, %10 : vector<32x256xf32>
    %12 = math.tanh %11 : vector<32x256xf32>
    %c64 = arith.constant 64 : index
    %c0_8 = arith.constant 0 : index
    %13 = vector.load %arg2[%c64, %c0_8] : memref<72x33xf32, #tpu.memory_space<vmem>>, vector<4x32xf32>
    %c64_9 = arith.constant 64 : index
    %c32_10 = arith.constant 32 : index
    %14 = vector.load %arg2[%c64_9, %c32_10] : memref<72x33xf32, #tpu.memory_space<vmem>>, vector<4x1xf32>
    %cst_11 = arith.constant dense<0.000000e+00> : vector<4x256xf32>
    %15 = tpu.matmul %13, %12, %cst_11 {dimension_numbers = #tpu.dot_dimension_numbers<[1], [0], [0], [1], [0, 0, 1, 1], [], []>} : vector<4x32xf32>, vector<32x256xf32>, vector<4x256xf32> -> vector<4x256xf32>
    %16 = vector.broadcast %14 : vector<4x1xf32> to vector<4x256xf32>
    %17 = arith.addf %15, %16 : vector<4x256xf32>
    %18 = arith.addf %0, %17 : vector<4x256xf32>
    %c0_12 = arith.constant 0 : index
    %c0_13 = arith.constant 0 : index
    %19 = vector.load %arg3[%c0_12, %c0_13] : memref<4x256xf32, #tpu.memory_space<vmem>>, vector<4x256xf32>
    tpu.vector_store %arg3[%c0_12, %c0_13], %18 {strides = array<i32>} : memref<4x256xf32, #tpu.memory_space<vmem>>, vector<4x256xf32>,
    return
  }
  func.func @transform_0(%arg0: i32) -> (i32, i32) {
    %c0_i32 = arith.constant 0 : i32
    %c0_i32_0 = arith.constant 0 : i32
    return %c0_i32, %arg0 : i32, i32
  }
  func.func @transform_1(%arg0: i32) -> (i32, i32) {
    %c0_i32 = arith.constant 0 : i32
    %c0_i32_0 = arith.constant 0 : i32
    %c0_i32_1 = arith.constant 0 : i32
    return %c0_i32, %c0_i32_0 : i32, i32
  }
  func.func @transform_2(%arg0: i32) -> (i32, i32) {
    %c0_i32 = arith.constant 0 : i32
    %c0_i32_0 = arith.constant 0 : i32
    return %c0_i32, %arg0 : i32, i32
  }
}

</mosaic_0001>

<llo_original>
// kernel: tpu_custom_call.1
$region0: #{tpu_custom_call.1}
  #allocation0 [shape = 'u32[]', space=smem, size = 0x4, offset = 0x4, fixed_abs, tag = 'smem constant byte address 0x4 - core index']
  #allocation1 [shape = 'u32[144,128]{1,0:T(1,128)}', space=vmem, size = 0x12000, scoped, tag = 'internal scratch']
  %s0 = inlined_call_operand.vmem [shape: f32[4,512], index: 0, kind: input, shape index: {}]
  %s1 = inlined_call_operand.vmem [shape: f32[72,33], index: 1, kind: input, shape index: {}]
  %s2 = inlined_call_operand.hbm [shape: f32[4,512], index: 2, kind: output, shape index: {}]
  %s3 = sld [smem:[#allocation0]]
  $region41: #{tpu_custom_call.1} parent=0
    _
  %s5 = ssub.s32 1, %s3
  %s6 = scalar_select 0, %s5, %s3
  $region1: #{tpu_custom_call.1} parent=0
    #allocation2 [shape = 'u8[8192]{0}', space=vmem, size = 0x2000, scoped, tag = 'output window, operand 0']
    #allocation3 [shape = 's32[2]{0}', space=sflag, size = 0x8, scoped, tag = 'scoped memory for tpu_custom_call.1']
    %7 = vsyncpa [#allocation3], 0
    %s8 = scalar_lea.sflag [#allocation3], 1
    %9 = vsyncpa %s8, 0
    loop: start=0, step=1, limit=4
    $region2: #{tpu_custom_call.1} parent=1 // loop_pre_header
      _
    $region3: #{tpu_custom_call.1} parent=1 // loop_header
      %s11 = sphi 0, %s15
      %p12 = scmp.ge.s32.totalorder %s11, 4
      %s21 = sphi 0, %s23
      %s24 = sphi 0, %s21
      %s25 = sphi 0, %s24
      %s41 = sphi 0, %s25
      %s45 = sphi 0, %s45
      %s47 = sphi 0, %s45
      %s48 = sphi 0, %s47
      %s62 = sphi 0, %s48
      %s68 = sphi 0, %s70
      %s71 = sphi 0, %s68
      %s72 = sphi 0, %s71
      %s88 = sphi 0, %s72
    $region4: #{tpu_custom_call.1} parent=1 // loop_header_branch
      %14 = sbr.rel (%p12) target = $region8
    $region5: #{tpu_custom_call.1} parent=1 // loop_body
      %s16 = ssub.s32 %s11, 1
      %s17 = ssub.s32 %s11, 2
      %s18 = sadd.s32 %s11, 1
      %s19 = ssub.s32 %s11, %s18
      %p20 = scmp.eq.s32.totalorder %s19, 0
      %s22 = sadd.s32 %s21, 1
      %s23 = scalar_select %p20, %s21, %s22
      %p26 = pneg %p20
      %p27 = scmp.eq.s32.totalorder %s11, 1
      %p28 = por %p26, %p27
      %p29 = scmp.ne.s32.totalorder %s21, %s24
      %p30 = scmp.eq.s32.totalorder %s11, 0
      %p31 = por %p29, %p30
      %p32 = scmp.ne.s32.totalorder %s21, %s24
      %p33 = scmp.eq.s32.totalorder %s16, 1
      %p34 = por %p32, %p33
      %p35 = scmp.ne.s32.totalorder %s24, %s25
      %p36 = scmp.eq.s32.totalorder %s16, 0
      %p37 = por %p35, %p36
      %p38 = scmp.ne.s32.totalorder %s24, %s25
      %p39 = scmp.eq.s32.totalorder %s17, 1
      %p40 = por %p38, %p39
      %p42 = scmp.ne.s32.totalorder %s25, %s41
      %p43 = scmp.eq.s32.totalorder %s17, 0
      %p44 = por %p42, %p43
      %s46 = sadd.s32 %s45, 1
      %p49 = scmp.eq.s32.totalorder %s11, 1
      %p50 = scmp.ne.s32.totalorder %s45, %s47
      %p51 = scmp.eq.s32.totalorder %s11, 0
      %p52 = por %p50, %p51
      %p53 = scmp.ne.s32.totalorder %s45, %s47
      %p54 = scmp.eq.s32.totalorder %s16, 1
      %p55 = por %p53, %p54
      %p56 = scmp.ne.s32.totalorder %s47, %s48
      %p57 = scmp.eq.s32.totalorder %s16, 0
      %p58 = por %p56, %p57
      %p59 = scmp.ne.s32.totalorder %s47, %s48
      %p60 = scmp.eq.s32.totalorder %s17, 1
      %p61 = por %p59, %p60
      %p63 = scmp.ne.s32.totalorder %s48, %s62
      %p64 = scmp.eq.s32.totalorder %s17, 0
      %p65 = por %p63, %p64
      %s66 = ssub.s32 %s11, %s18
      %p67 = scmp.eq.s32.totalorder %s66, 0
      %s69 = sadd.s32 %s68, 1
      %s70 = scalar_select %p67, %s68, %s69
      %p73 = pneg %p67
      %p74 = scmp.eq.s32.totalorder %s11, 1
      %p75 = por %p73, %p74
      %p76 = scmp.ne.s32.totalorder %s68, %s71
      %p77 = scmp.eq.s32.totalorder %s11, 0
      %p78 = por %p76, %p77
      %p79 = scmp.ne.s32.totalorder %s68, %s71
      %p80 = scmp.eq.s32.totalorder %s16, 1
      %p81 = por %p79, %p80
      %p82 = scmp.ne.s32.totalorder %s71, %s72
      %p83 = scmp.eq.s32.totalorder %s16, 0
      %p84 = por %p82, %p83
      %p85 = scmp.ne.s32.totalorder %s71, %s72
      %p86 = scmp.eq.s32.totalorder %s17, 1
      %p87 = por %p85, %p86
      %p89 = scmp.ne.s32.totalorder %s72, %s88
      %p90 = scmp.eq.s32.totalorder %s17, 0
      %p91 = por %p89, %p90
      %p92 = scmp.le.s32.totalorder 1, %s11
      %p93 = scmp.lt.s32.totalorder %s11, 3
      %p94 = pnand %p92, %p93
      %p95 = pneg %p94
      // Predicated region
      $region9: #{tpu_custom_call.1} parent=5 // pred_check
        _
      $region10: #{tpu_custom_call.1} parent=5 // pred_check_branch
        %97 = sbr.rel (%p94) target = $region12
      $region11: #{tpu_custom_call.1} parent=5 // pred_region
        %s98 = ssub.s32 %s11, 1
        // Predicated region
        $region13: #{tpu_custom_call.1} parent=11 // pred_check
          %p99 = pneg %p58
        $region14: #{tpu_custom_call.1} parent=11 // pred_check_branch
          %101 = sbr.rel (%p99) target = $region16
        $region15: #{tpu_custom_call.1} parent=11 // pred_region
          _
        $region16: #{tpu_custom_call.1} parent=11 // pred_fallthru
          _
      $region12: #{tpu_custom_call.1} parent=5 // pred_fallthru
        _
      %p102 = scmp.lt.s32.totalorder %s11, 2
      // Predicated region
      $region17: #{tpu_custom_call.1} parent=5 // pred_check
        %p103 = pneg %p102
      $region18: #{tpu_custom_call.1} parent=5 // pred_check_branch
        %105 = sbr.rel (%p103) target = $region20
      $region19: #{tpu_custom_call.1} parent=5 // pred_region
        // Predicated region
        $region21: #{tpu_custom_call.1} parent=19 // pred_check
          %p106 = pneg %p31
        $region22: #{tpu_custom_call.1} parent=19 // pred_check_branch
          %108 = sbr.rel (%p106) target = $region24
        $region23: #{tpu_custom_call.1} parent=19 // pred_region
          %s109 = smul.u32 2, %s11
          %p110 = scmp.lt.s32.totalorder %s109, 3
          %s111 = scalar_select %p110, %s109, 3
          %s112 = smul.addr %s111, 4
          %s113 = scalar_lea.vmem %s0, %s112
          %s114 = smul.u32 2, %s11
        $region24: #{tpu_custom_call.1} parent=19 // pred_fallthru
          _
      $region20: #{tpu_custom_call.1} parent=5 // pred_fallthru
        _
      %p115 = scmp.le.s32.totalorder 1, %s11
      %p116 = scmp.lt.s32.totalorder %s11, 3
      %p117 = pnand %p115, %p116
      %p118 = pneg %p117
      // Predicated region
      $region25: #{tpu_custom_call.1} parent=5 // pred_check
        _
      $region26: #{tpu_custom_call.1} parent=5 // pred_check_branch
        %120 = sbr.rel (%p117) target = $region28
      $region27: #{tpu_custom_call.1} parent=5 // pred_region
        %s121 = ssub.s32 %s11, 1
        %s122 = smul.u32 2, %s16
        %p123 = scmp.lt.s32.totalorder %s122, 3
        %s124 = scalar_select %p123, %s122, 3
        %s125 = smul.addr %s124, 4
        %s126 = scalar_lea.vmem %s0, %s125
        %p127 = pneg %p37
        %p128 = pneg %p34
        %p129 = pneg %p58
        %p130 = pneg %p55
        %p131 = pneg %p84
        %p132 = pneg %p81
        %s133 = sand.u32 %s71, 1
        %s134 = scalar_lea.sflag [#allocation3], %s133
        %s135 = sand.u32 %s71, 1
        %s136 = smul.addr %s135, 8
        %s137 = scalar_lea.vmem [#allocation2], %s136
        %s138 = smul.u32 2, %s16
        %p139 = scmp.lt.s32.totalorder %s138, 3
        %s140 = scalar_select %p139, %s138, 3
        %s141 = smul.addr %s140, 4
        %s142 = scalar_lea.vmem %s0, %s141
        %s143 = smul.u32 2, %s16
        %s144 = smul.u32 2, %s16
        %v145 = vld [vmem:[%s142] sm:$0xff]
        %v146 = vld [vmem:[%s1] sm:$0xff]
        %v147 = vld [vmem:[%s1 + $0x8] sm:$0xff]
        %v148 = vld [vmem:[%s1 + $0x10] sm:$0xff]
        %v149 = vld [vmem:[%s1 + $0x18] sm:$0xff]
        %151 = vset.pattern.permute.xlu0 4
        %152 = vperm.xlu0 %151, %v146
        %v153 = vpop.permute.xlu0 %152
        %156 = vset.pattern.permute.xlu0 4
        %157 = vperm.xlu0 %156, %v147
        %v158 = vpop.permute.xlu0 %157
        %161 = vset.pattern.permute.xlu0 4
        %162 = vperm.xlu0 %161, %v148
        %v163 = vpop.permute.xlu0 %162
        %166 = vset.pattern.permute.xlu0 4
        %167 = vperm.xlu0 %166, %v149
        %v168 = vpop.permute.xlu0 %167
        %v171 = vcombine.high %v145, %v145
        %vm172 = vcmask 31744
        %v173 = vsel %vm172, %v146, 0
        %v175 = vsel %vm172, %v147, 0
        %v177 = vsel %vm172, %v148, 0
        %v179 = vsel %vm172, %v149, 0
        %vm181 = vcmask 1043456
        %v182 = vsel %vm181, %v145, 0
        %v184 = vsel %vm181, %v171, 0
        %186 = vmatprep.subr.mxu0 %v184
        %187 = vmatpush1.msra.mxu0 %v182
        %188 = vmatprep.subr.mxu0 0.0
        %189 = vmatpush1.msra.mxu0 0.0
        %190 = vmatprep.subr.mxu0 0.0
        %191 = vmatpush1.msra.mxu0 0.0
        %192 = vmatprep.subr.mxu0 0.0
        %193 = vmatpush1.msra.mxu0 0.0
        %194 = vmatprep.subr.mxu0 0.0
        %195 = vmatpush1.msra.mxu0 0.0
        %196 = vmatprep.subr.mxu0 0.0
        %197 = vmatpush1.msra.mxu0 0.0
        %198 = vmatprep.subr.mxu0 0.0
        %199 = vmatpush1.msra.mxu0 0.0
        %200 = vmatprep.subr.mxu0 0.0
        %201 = vmatpush1.msra.mxu0 0.0
        %202 = vmatprep.subr.mxu0 0.0
        %203 = vmatpush1.msra.mxu0 0.0
        %204 = vmatprep.subr.mxu0 0.0
        %205 = vmatpush1.msra.mxu0 0.0
        %206 = vmatprep.subr.mxu0 0.0
        %207 = vmatpush1.msra.mxu0 0.0
        %208 = vmatprep.subr.mxu0 0.0
        %209 = vmatpush1.msra.mxu0 0.0
        %210 = vmatprep.subr.mxu0 0.0
        %211 = vmatpush1.msra.mxu0 0.0
        %212 = vmatprep.subr.mxu0 0.0
        %213 = vmatpush1.msra.mxu0 0.0
        %214 = vmatprep.subr.mxu0 0.0
        %215 = vmatpush1.msra.mxu0 0.0
        %216 = vmatprep.subr.mxu0 0.0
        %217 = vmatpush1.msra.mxu0 0.0
        %218 = vmatprep.subr.mxu0 0.0
        %219 = vmatpush1.msra.mxu0 0.0
        %220 = vmatprep.subr.mxu0 0.0
        %221 = vmatpush1.msra.mxu0 0.0
        %222 = vmatprep.subr.mxu0 0.0
        %223 = vmatpush1.msra.mxu0 0.0
        %224 = vmatprep.subr.mxu0 0.0
        %225 = vmatpush1.msra.mxu0 0.0
        %226 = vmatprep.subr.mxu0 0.0
        %227 = vmatpush1.msra.mxu0 0.0
        %228 = vmatprep.subr.mxu0 0.0
        %229 = vmatpush1.msra.mxu0 0.0
        %230 = vmatprep.subr.mxu0 0.0
        %231 = vmatpush1.msra.mxu0 0.0
        %232 = vmatprep.subr.mxu0 0.0
        %233 = vmatpush1.msra.mxu0 0.0
        %234 = vmatprep.subr.mxu0 0.0
        %235 = vmatpush1.msra.mxu0 0.0
        %236 = vmatprep.subr.mxu0 0.0
        %237 = vmatpush1.msra.mxu0 0.0
        %238 = vmatprep.subr.mxu0 0.0
        %239 = vmatpush1.msra.mxu0 0.0
        %240 = vmatprep.subr.mxu0 0.0
        %241 = vmatpush1.msra.mxu0 0.0
        %242 = vmatprep.subr.mxu0 0.0
        %243 = vmatpush1.msra.mxu0 0.0
        %244 = vmatprep.subr.mxu0 0.0
        %245 = vmatpush1.msra.mxu0 0.0
        %246 = vmatprep.subr.mxu0 0.0
        %247 = vmatpush1.msra.mxu0 0.0
        %248 = vmatprep.subr.mxu0 0.0
        %249 = vmatpush1.msra.mxu0 0.0
        %250 = vmatprep.mubr.f32.mxu0 0.0
        %251 = vmatmul.mubr.f32.gmra.mrb[0].mxu0 %v173
        %v252 = vpop.f32.mrb[0].mxu0
        %v253 = vadd.f32 %v153, %v252
        %v254 = vpop.f32.mrb[0].mxu0
        %v255 = vadd.f32 %v153, %v254
        %256 = vmatprep.mubr.f32.mxu0 0.0
        %257 = vmatmul.mubr.f32.gmra.mrb[0].mxu0 %v175
        %v258 = vpop.f32.mrb[0].mxu0
        %v259 = vadd.f32 %v158, %v258
        %v260 = vpop.f32.mrb[0].mxu0
        %v261 = vadd.f32 %v158, %v260
        %262 = vmatprep.mubr.f32.mxu0 0.0
        %263 = vmatmul.mubr.f32.gmra.mrb[0].mxu0 %v177
        %v264 = vpop.f32.mrb[0].mxu0
        %v265 = vadd.f32 %v163, %v264
        %v266 = vpop.f32.mrb[0].mxu0
        %v267 = vadd.f32 %v163, %v266
        %268 = vmatprep.mubr.f32.mxu0 0.0
        %269 = vmatmul.mubr.f32.gmra.mrb[0].mxu0 %v179
        %v270 = vpop.f32.mrb[0].mxu0
        %v271 = vadd.f32 %v168, %v270
        %v272 = vpop.f32.mrb[0].mxu0
        %v273 = vadd.f32 %v168, %v272
        %274 = vdwg.mxu0
        %v275 = vtanh.pop %v253
        %v276 = vtanh.pop %v255
        %v277 = vtanh.pop %v259
        %v278 = vtanh.pop %v261
        %v279 = vtanh.pop %v265
        %v280 = vtanh.pop %v267
        %v281 = vtanh.pop %v271
        %v282 = vtanh.pop %v273
        %v283 = vld [vmem:[%s1 + $0x20] sm:$0xff]
        %v284 = vld [vmem:[%s1 + $0x28] sm:$0xff]
        %v285 = vld [vmem:[%s1 + $0x30] sm:$0xff]
        %v286 = vld [vmem:[%s1 + $0x38] sm:$0xff]
        %288 = vset.pattern.permute.xlu0 32
        %289 = vperm.xlu0 %288, %v283
        %v290 = vpop.permute.xlu0 %289
        %293 = vset.pattern.permute.xlu0 32
        %294 = vperm.xlu0 %293, %v284
        %v295 = vpop.permute.xlu0 %294
        %298 = vset.pattern.permute.xlu0 32
        %299 = vperm.xlu0 %298, %v285
        %v300 = vpop.permute.xlu0 %299
        %303 = vset.pattern.permute.xlu0 32
        %304 = vperm.xlu0 %303, %v286
        %v305 = vpop.permute.xlu0 %304
        %vm307 = vcmask 261120
        %v308 = vsel %vm307, %v283, 0
        %v310 = vsel %vm307, %v284, 0
        %v312 = vsel %vm307, %v285, 0
        %v314 = vsel %vm307, %v286, 0
        %316 = vmatprep.subr.mxu0 %v276
        %317 = vmatpush1.msra.mxu0 %v275
        %318 = vmatprep.subr.mxu0 %v278
        %319 = vmatpush1.msra.mxu0 %v277
        %320 = vmatprep.subr.mxu0 %v280
        %321 = vmatpush1.msra.mxu0 %v279
        %322 = vmatprep.subr.mxu0 %v282
        %323 = vmatpush1.msra.mxu0 %v281
        %324 = vmatprep.subr.mxu0 0.0
        %325 = vmatpush1.msra.mxu0 0.0
        %326 = vmatprep.subr.mxu0 0.0
        %327 = vmatpush1.msra.mxu0 0.0
        %328 = vmatprep.subr.mxu0 0.0
        %329 = vmatpush1.msra.mxu0 0.0
        %330 = vmatprep.subr.mxu0 0.0
        %331 = vmatpush1.msra.mxu0 0.0
        %332 = vmatprep.subr.mxu0 0.0
        %333 = vmatpush1.msra.mxu0 0.0
        %334 = vmatprep.subr.mxu0 0.0
        %335 = vmatpush1.msra.mxu0 0.0
        %336 = vmatprep.subr.mxu0 0.0
        %337 = vmatpush1.msra.mxu0 0.0
        %338 = vmatprep.subr.mxu0 0.0
        %339 = vmatpush1.msra.mxu0 0.0
        %340 = vmatprep.subr.mxu0 0.0
        %341 = vmatpush1.msra.mxu0 0.0
        %342 = vmatprep.subr.mxu0 0.0
        %343 = vmatpush1.msra.mxu0 0.0
        %344 = vmatprep.subr.mxu0 0.0
        %345 = vmatpush1.msra.mxu0 0.0
        %346 = vmatprep.subr.mxu0 0.0
        %347 = vmatpush1.msra.mxu0 0.0
        %348 = vmatprep.subr.mxu0 0.0
        %349 = vmatpush1.msra.mxu0 0.0
        %350 = vmatprep.subr.mxu0 0.0
        %351 = vmatpush1.msra.mxu0 0.0
        %352 = vmatprep.subr.mxu0 0.0
        %353 = vmatpush1.msra.mxu0 0.0
        %354 = vmatprep.subr.mxu0 0.0
        %355 = vmatpush1.msra.mxu0 0.0
        %356 = vmatprep.subr.mxu0 0.0
        %357 = vmatpush1.msra.mxu0 0.0
        %358 = vmatprep.subr.mxu0 0.0
        %359 = vmatpush1.msra.mxu0 0.0
        %360 = vmatprep.subr.mxu0 0.0
        %361 = vmatpush1.msra.mxu0 0.0
        %362 = vmatprep.subr.mxu0 0.0
        %363 = vmatpush1.msra.mxu0 0.0
        %364 = vmatprep.subr.mxu0 0.0
        %365 = vmatpush1.msra.mxu0 0.0
        %366 = vmatprep.subr.mxu0 0.0
        %367 = vmatpush1.msra.mxu0 0.0
        %368 = vmatprep.subr.mxu0 0.0
        %369 = vmatpush1.msra.mxu0 0.0
        %370 = vmatprep.subr.mxu0 0.0
        %371 = vmatpush1.msra.mxu0 0.0
        %372 = vmatprep.subr.mxu0 0.0
        %373 = vmatpush1.msra.mxu0 0.0
        %374 = vmatprep.subr.mxu0 0.0
        %375 = vmatpush1.msra.mxu0 0.0
        %376 = vmatprep.subr.mxu0 0.0
        %377 = vmatpush1.msra.mxu0 0.0
        %378 = vmatprep.subr.mxu0 0.0
        %379 = vmatpush1.msra.mxu0 0.0
        %380 = vmatprep.mubr.f32.mxu0 0.0
        %381 = vmatmul.mubr.f32.gmra.mrb[0].mxu0 %v308
        %v382 = vpop.f32.mrb[0].mxu0
        %v383 = vadd.f32 %v290, %v382
        %v384 = vpop.f32.mrb[0].mxu0
        %v385 = vadd.f32 %v290, %v384
        %386 = vmatprep.mubr.f32.mxu0 0.0
        %387 = vmatmul.mubr.f32.gmra.mrb[0].mxu0 %v310
        %v388 = vpop.f32.mrb[0].mxu0
        %v389 = vadd.f32 %v295, %v388
        %v390 = vpop.f32.mrb[0].mxu0
        %v391 = vadd.f32 %v295, %v390
        %392 = vmatprep.mubr.f32.mxu0 0.0
        %393 = vmatmul.mubr.f32.gmra.mrb[0].mxu0 %v312
        %v394 = vpop.f32.mrb[0].mxu0
        %v395 = vadd.f32 %v300, %v394
        %v396 = vpop.f32.mrb[0].mxu0
        %v397 = vadd.f32 %v300, %v396
        %398 = vmatprep.mubr.f32.mxu0 0.0
        %399 = vmatmul.mubr.f32.gmra.mrb[0].mxu0 %v314
        %v400 = vpop.f32.mrb[0].mxu0
        %v401 = vadd.f32 %v305, %v400
        %v402 = vpop.f32.mrb[0].mxu0
        %v403 = vadd.f32 %v305, %v402
        %404 = vdwg.mxu0
        %v405 = vtanh.pop %v383
        %v406 = vtanh.pop %v385
        %v407 = vtanh.pop %v389
        %v408 = vtanh.pop %v391
        %v409 = vtanh.pop %v395
        %v410 = vtanh.pop %v397
        %v411 = vtanh.pop %v401
        %v412 = vtanh.pop %v403
        %v413 = vld [vmem:[%s1 + $0x40] sm:$0xf]
        %415 = vset.pattern.permute.xlu0 32
        %416 = vperm.xlu0 %415, %v413
        %v417 = vpop.permute.xlu0 %416
        %v419 = vsel %vm307, %v413, 0
        %421 = vmatprep.subr.mxu0 %v406
        %422 = vmatpush1.msra.mxu0 %v405
        %423 = vmatprep.subr.mxu0 %v408
        %424 = vmatpush1.msra.mxu0 %v407
        %425 = vmatprep.subr.mxu0 %v410
        %426 = vmatpush1.msra.mxu0 %v409
        %427 = vmatprep.subr.mxu0 %v412
        %428 = vmatpush1.msra.mxu0 %v411
        %429 = vmatprep.subr.mxu0 0.0
        %430 = vmatpush1.msra.mxu0 0.0
        %431 = vmatprep.subr.mxu0 0.0
        %432 = vmatpush1.msra.mxu0 0.0
        %433 = vmatprep.subr.mxu0 0.0
        %434 = vmatpush1.msra.mxu0 0.0
        %435 = vmatprep.subr.mxu0 0.0
        %436 = vmatpush1.msra.mxu0 0.0
        %437 = vmatprep.subr.mxu0 0.0
        %438 = vmatpush1.msra.mxu0 0.0
        %439 = vmatprep.subr.mxu0 0.0
        %440 = vmatpush1.msra.mxu0 0.0
        %441 = vmatprep.subr.mxu0 0.0
        %442 = vmatpush1.msra.mxu0 0.0
        %443 = vmatprep.subr.mxu0 0.0
        %444 = vmatpush1.msra.mxu0 0.0
        %445 = vmatprep.subr.mxu0 0.0
        %446 = vmatpush1.msra.mxu0 0.0
        %447 = vmatprep.subr.mxu0 0.0
        %448 = vmatpush1.msra.mxu0 0.0
        %449 = vmatprep.subr.mxu0 0.0
        %450 = vmatpush1.msra.mxu0 0.0
        %451 = vmatprep.subr.mxu0 0.0
        %452 = vmatpush1.msra.mxu0 0.0
        %453 = vmatprep.subr.mxu0 0.0
        %454 = vmatpush1.msra.mxu0 0.0
        %455 = vmatprep.subr.mxu0 0.0
        %456 = vmatpush1.msra.mxu0 0.0
        %457 = vmatprep.subr.mxu0 0.0
        %458 = vmatpush1.msra.mxu0 0.0
        %459 = vmatprep.subr.mxu0 0.0
        %460 = vmatpush1.msra.mxu0 0.0
        %461 = vmatprep.subr.mxu0 0.0
        %462 = vmatpush1.msra.mxu0 0.0
        %463 = vmatprep.subr.mxu0 0.0
        %464 = vmatpush1.msra.mxu0 0.0
        %465 = vmatprep.subr.mxu0 0.0
        %466 = vmatpush1.msra.mxu0 0.0
        %467 = vmatprep.subr.mxu0 0.0
        %468 = vmatpush1.msra.mxu0 0.0
        %469 = vmatprep.subr.mxu0 0.0
        %470 = vmatpush1.msra.mxu0 0.0
        %471 = vmatprep.subr.mxu0 0.0
        %472 = vmatpush1.msra.mxu0 0.0
        %473 = vmatprep.subr.mxu0 0.0
        %474 = vmatpush1.msra.mxu0 0.0
        %475 = vmatprep.subr.mxu0 0.0
        %476 = vmatpush1.msra.mxu0 0.0
        %477 = vmatprep.subr.mxu0 0.0
        %478 = vmatpush1.msra.mxu0 0.0
        %479 = vmatprep.subr.mxu0 0.0
        %480 = vmatpush1.msra.mxu0 0.0
        %481 = vmatprep.subr.mxu0 0.0
        %482 = vmatpush1.msra.mxu0 0.0
        %483 = vmatprep.subr.mxu0 0.0
        %484 = vmatpush1.msra.mxu0 0.0
        %485 = vmatprep.mubr.f32.mxu0 0.0
        %486 = vmatmul.mubr.f32.gmra.mrb[0].mxu0 %v419
        %v487 = vpop.f32.mrb[0].mxu0
        %v488 = vadd.f32 %v417, %v487
        %v489 = vpop.f32.mrb[0].mxu0
        %v490 = vadd.f32 %v417, %v489
        %491 = vdwg.mxu0
        %v494 = vcombine.low %v488, %v490
        %v496 = vadd.f32 %v145, %v494
        %497 = vst [vmem:[%s137] sm:$0xff] %v496
        %s498 = sand.u32 %s71, 1
        %s499 = scalar_lea.sflag [#allocation3], %s498
        %s500 = sand.u32 %s71, 1
        %s501 = smul.addr %s500, 8
        %s502 = scalar_lea.vmem [#allocation2], %s501
        // Predicated region
        $region29: #{tpu_custom_call.1} parent=27 // pred_check
          %p503 = pneg %p81
        $region30: #{tpu_custom_call.1} parent=27 // pred_check_branch
          %505 = sbr.rel (%p503) target = $region32
        $region31: #{tpu_custom_call.1} parent=27 // pred_region
          %s506 = smul.u32 2, %s16
          %s508 = ssub.s32 128, 128
          %509 = vsyncadd %s499, %s508
          %s510 = smul.addr %s506, 64
          %s511 = scalar_lea.hbm %s2, %s510
          %s513 = sshll.u32 %s502, 4
          %s514 = int_to_ptr.vmem [resolvable:$true] %s513
          %516 = dma.vmem_to_hbm [thread:$0]  %s514, 128, %s511, %s499
        $region32: #{tpu_custom_call.1} parent=27 // pred_fallthru
          _
      $region28: #{tpu_custom_call.1} parent=5 // pred_fallthru
        _
      %p517 = scmp.le.s32.totalorder 2, %s11
      // Predicated region
      $region33: #{tpu_custom_call.1} parent=5 // pred_check
        %p518 = pneg %p517
      $region34: #{tpu_custom_call.1} parent=5 // pred_check_branch
        %520 = sbr.rel (%p518) target = $region36
      $region35: #{tpu_custom_call.1} parent=5 // pred_region
        %s521 = ssub.s32 %s11, 2
        // Predicated region
        $region37: #{tpu_custom_call.1} parent=35 // pred_check
          %p522 = pneg %p87
        $region38: #{tpu_custom_call.1} parent=35 // pred_check_branch
          %524 = sbr.rel (%p522) target = $region40
        $region39: #{tpu_custom_call.1} parent=35 // pred_region
          %s525 = sand.u32 %s72, 1
          %s526 = scalar_lea.sflag [#allocation3], %s525
          %s527 = sand.u32 %s72, 1
          %s528 = smul.addr %s527, 8
          %s529 = scalar_lea.vmem [#allocation2], %s528
          %530 = dma.done %s526, 128
        $region40: #{tpu_custom_call.1} parent=35 // pred_fallthru
          _
      $region36: #{tpu_custom_call.1} parent=5 // pred_fallthru
        _
    $region6: #{tpu_custom_call.1} parent=1 // loop_footer
      %s15 = sadd.s32 1, %s11
    $region7: #{tpu_custom_call.1} parent=1 // loop_footer_branch
      %10 = sbr.rel target = $region3
    $region8: #{tpu_custom_call.1} parent=1 // loop_exit
      _
    %531 = vsyncpa [#allocation3], 1
    %s532 = scalar_lea.sflag [#allocation3], 1
    %533 = vsyncpa %s532, 1

</llo_original>
